<compile_context>
chip_gen: v7x
topology: tpu7x:2x2x1
jax: 0.10.0
libtpu: 0.0.40
codegen_flags: <defaults>
</compile_context>

<pallas_src>
import functools

import jax
import jax.numpy as jnp
from jax.experimental import pallas as pl
from jax.experimental.pallas import tpu as pltpu

LANE = 128     # vreg lane width
SUBLANE = 8    # f32 sublane count


def _round_up(x: int, m: int) -> int:
    return ((x + m - 1) // m) * m


def dqn_kernel(x_ref, w1_ref, b1_ref, w2_ref, b2_ref, o_ref):
    # fc1: bf16 x @ bf16 W1 on the MXU with f32 accumulation.
    h = jnp.dot(x_ref[...], w1_ref[...], preferred_element_type=jnp.float32)
    # bias + ReLU in f32 on the VPU (v5e has no bf16 VPU path).
    h = jnp.maximum(h + b1_ref[...], 0.0)            # (TB, Hp) + (1, Hp)
    # fc2: f32 x f32, output lanes stay at the true O (no padding).
    y = jnp.dot(h, w2_ref[...], preferred_element_type=jnp.float32)
    o_ref[...] = (y + b2_ref[...]).astype(o_ref.dtype)   # (TB, O) + (1, O)


def prepare_dqn_params(w1, b1, w2, b2, *, matmul_dtype=jnp.bfloat16):
    """One-time param prep: pad hidden dim to 128 lanes, cast W1 to bf16.

    w1: (In, H), b1: (1, H) or (H,), w2: (H, O), b2: (1, O) or (O,)
    Returns (w1p, b1p, w2p, b2p) ready for dqn_forward.
    """
    In, H = w1.shape
    O = w2.shape[1]
    Hp = _round_up(H, LANE)
    w1p = jnp.zeros((In, Hp), matmul_dtype).at[:, :H].set(w1.astype(matmul_dtype))
    b1p = jnp.zeros((1, Hp), jnp.float32).at[:, :H].set(
        jnp.asarray(b1, jnp.float32).reshape(1, H))
    w2p = jnp.zeros((Hp, O), jnp.float32).at[:H, :].set(w2.astype(jnp.float32))
    b2p = jnp.asarray(b2, jnp.float32).reshape(1, O)
    return w1p, b1p, w2p, b2p


@functools.partial(jax.jit, static_argnames=("block_b",))
def dqn_forward(x, w1p, b1p, w2p, b2p, *, block_b: int = 2048):
    """x: (B, In) f32; prepped params from prepare_dqn_params -> (B, O) f32."""
    B, In = x.shape
    Hp = w1p.shape[1]
    O = w2p.shape[1]

    # Cast the streaming matmul operand to match W1's dtype (bf16 by default).
    x_mm = x.astype(w1p.dtype)

    # --- Batch tile selection --------------------------------------------
    # Multiple of the f32 sublane; capped at half the (rounded) batch so big
    # batches always give >= 2 grid steps for megacore sharding on v7x, and
    # at block_b so double-buffered VMEM stays small on v5e/v7x.
    Bp8 = _round_up(B, SUBLANE)
    half = _round_up(pl.cdiv(Bp8, 2), SUBLANE)
    TB = max(SUBLANE, min(block_b, half))
    TB = _round_up(TB, SUBLANE)
    n_tiles = pl.cdiv(B, TB)
    Bp = n_tiles * TB
    # Only materialize a zero-padded x copy when B is not a tile multiple.
    xp = x_mm if Bp == B else jnp.zeros((Bp, In), x_mm.dtype).at[:B, :].set(x_mm)

    vmem = pltpu.MemorySpace.VMEM
    out = pl.pallas_call(
        dqn_kernel,
        out_shape=jax.ShapeDtypeStruct((Bp, O), jnp.float32),
        grid=(n_tiles,),
        in_specs=[
            # x tile marches along the batch; weights/biases stay resident
            # (constant index_map -> fetched once, no per-tile re-DMA).
            pl.BlockSpec((TB, In), lambda i: (i, 0), memory_space=vmem),
            pl.BlockSpec((In, Hp), lambda i: (0, 0), memory_space=vmem),
            pl.BlockSpec((1, Hp), lambda i: (0, 0), memory_space=vmem),
            pl.BlockSpec((Hp, O), lambda i: (0, 0), memory_space=vmem),
            pl.BlockSpec((1, O), lambda i: (0, 0), memory_space=vmem),
        ],
        # Last dim O equals the full array dim -> legal sub-(8,128) block;
        # no padded output lanes, no post-kernel column slice.
        out_specs=pl.BlockSpec((TB, O), lambda i: (i, 0), memory_space=vmem),
        compiler_params=pltpu.CompilerParams(
            dimension_semantics=("parallel",),
        ),
    )(xp, w1p, b1p, w2p, b2p)

    return out[:B] if Bp != B else out


def init_dqn_params(key, input_size, hidden_size, output_size):
    """Deterministic init mimicking nn.Linear's U(-1/sqrt(fan_in), 1/sqrt(fan_in))."""
    k1, k2, k3, k4 = jax.random.split(key, 4)
    bound1 = 1.0 / jnp.sqrt(input_size)
    bound2 = 1.0 / jnp.sqrt(hidden_size)
    w1 = jax.random.uniform(k1, (input_size, hidden_size), jnp.float32, -bound1, bound1)
    b1 = jax.random.uniform(k2, (1, hidden_size), jnp.float32, -bound1, bound1)
    w2 = jax.random.uniform(k3, (hidden_size, output_size), jnp.float32, -bound2, bound2)
    b2 = jax.random.uniform(k4, (1, output_size), jnp.float32, -bound2, bound2)
    return w1, b1, w2, b2


if __name__ == "__main__":
    # Shapes consistent with DQN(input_size, hidden_size, output_size).
    input_size, hidden_size, output_size = 4, 32, 4

    key = jax.random.PRNGKey(0)
    kx, kp, kb = jax.random.split(key, 3)
    w1, b1, w2, b2 = init_dqn_params(kp, input_size, hidden_size, output_size)
    params = prepare_dqn_params(w1, b1, w2, b2)   # one-time: pad H->128, W1->bf16

    def ref_f32(xx):   # exact torch semantics (f32 everywhere)
        return jnp.maximum(xx @ w1 + b1, 0.0) @ w2 + b2

    def ref_bf16(xx):  # same bf16-operand / f32-accumulate numerics as the kernel
        h = jnp.dot(xx.astype(jnp.bfloat16), w1.astype(jnp.bfloat16),
                    preferred_element_type=jnp.float32)
        h = jnp.maximum(h + b1, 0.0)
        y = jnp.dot(h, w2, preferred_element_type=jnp.float32,
                    precision=jax.lax.Precision.HIGHEST)
        return y + b2

    # 1) Tiny single-agent batch (the RL action-selection case).
    x_small = jax.random.normal(kx, (2, input_size), jnp.float32)
    out_small = jax.block_until_ready(dqn_forward(x_small, *params))
    assert out_small.shape == (2, output_size)
    assert jnp.allclose(out_small, ref_bf16(x_small), atol=1e-3, rtol=1e-3)
    assert jnp.allclose(out_small, ref_f32(x_small), atol=5e-2, rtol=5e-2)

    # 2) Replay-buffer-style batch: exercises the batch grid (2 tiles of 512,
    #    resident weights, pipelined x/out DMAs, megacore-shardable grid).
    x_big = jax.random.normal(kb, (1024, input_size), jnp.float32)
    out_big = jax.block_until_ready(dqn_forward(x_big, *params))
    assert out_big.shape == (1024, output_size)
    assert jnp.allclose(out_big, ref_bf16(x_big), atol=1e-3, rtol=1e-3)
    assert jnp.allclose(out_big, ref_f32(x_big), atol=5e-2, rtol=5e-2)

    print("KERNEL_OK")
</pallas_src>

<mosaic_0001>
module attributes {stable_mosaic.version = 11 : i64} {
  func.func @dqn_kernel(%arg0: i32, %arg1: memref<8x4xbf16, #tpu.memory_space<vmem>>, %arg2: memref<4x128xbf16, #tpu.memory_space<vmem>>, %arg3: memref<1x128xf32, #tpu.memory_space<vmem>>, %arg4: memref<128x4xf32, #tpu.memory_space<vmem>>, %arg5: memref<1x4xf32, #tpu.memory_space<vmem>>, %arg6: memref<8x4xf32, #tpu.memory_space<vmem>>) attributes {dimension_semantics = [#tpu.dimension_semantics<parallel>], iteration_bounds = array<i64: 1>, scalar_prefetch = 0 : i64, scratch_operands = 0 : i64, tpu.core_type = #tpu.core_type<tc>, window_params = [{transform_indices = @transform_0, window_bounds = array<i64: 8, 4>}, {pipeline_mode = #tpu.pipeline_mode<synchronous>, transform_indices = @transform_1, window_bounds = array<i64: 4, 128>}, {pipeline_mode = #tpu.pipeline_mode<synchronous>, transform_indices = @transform_2, window_bounds = array<i64: 1, 128>}, {pipeline_mode = #tpu.pipeline_mode<synchronous>, transform_indices = @transform_3, window_bounds = array<i64: 128, 4>}, {pipeline_mode = #tpu.pipeline_mode<synchronous>, transform_indices = @transform_4, window_bounds = array<i64: 1, 4>}, {transform_indices = @transform_5, window_bounds = array<i64: 8, 4>}]} {
    %c0 = arith.constant 0 : index
    %c0_0 = arith.constant 0 : index
    %0 = vector.load %arg1[%c0, %c0_0] : memref<8x4xbf16, #tpu.memory_space<vmem>>, vector<8x4xbf16>
    %c0_1 = arith.constant 0 : index
    %c0_2 = arith.constant 0 : index
    %1 = vector.load %arg2[%c0_1, %c0_2] : memref<4x128xbf16, #tpu.memory_space<vmem>>, vector<4x128xbf16>
    %cst = arith.constant dense<0.000000e+00> : vector<8x128xf32>
    %2 = tpu.matmul %0, %1, %cst {dimension_numbers = #tpu.dot_dimension_numbers<[1], [0], [0], [1], [0, 0, 1, 1], [], []>} : vector<8x4xbf16>, vector<4x128xbf16>, vector<8x128xf32> -> vector<8x128xf32>
    %c0_3 = arith.constant 0 : index
    %c0_4 = arith.constant 0 : index
    %3 = vector.load %arg3[%c0_3, %c0_4] : memref<1x128xf32, #tpu.memory_space<vmem>>, vector<1x128xf32>
    %4 = vector.broadcast %3 : vector<1x128xf32> to vector<8x128xf32>
    %5 = arith.addf %2, %4 : vector<8x128xf32>
    %cst_5 = arith.constant 0.000000e+00 : f32
    %6 = vector.broadcast %cst_5 : f32 to vector<8x128xf32>
    %7 = arith.maximumf %5, %6 : vector<8x128xf32>
    %c0_6 = arith.constant 0 : index
    %c0_7 = arith.constant 0 : index
    %8 = vector.load %arg4[%c0_6, %c0_7] : memref<128x4xf32, #tpu.memory_space<vmem>>, vector<128x4xf32>
    %cst_8 = arith.constant dense<0.000000e+00> : vector<8x4xf32>
    %9 = tpu.matmul %7, %8, %cst_8 {dimension_numbers = #tpu.dot_dimension_numbers<[1], [0], [0], [1], [0, 0, 1, 1], [], []>} : vector<8x128xf32>, vector<128x4xf32>, vector<8x4xf32> -> vector<8x4xf32>
    %c0_9 = arith.constant 0 : index
    %c0_10 = arith.constant 0 : index
    %10 = vector.load %arg5[%c0_9, %c0_10] : memref<1x4xf32, #tpu.memory_space<vmem>>, vector<1x4xf32>
    %11 = vector.broadcast %10 : vector<1x4xf32> to vector<8x4xf32>
    %12 = arith.addf %9, %11 : vector<8x4xf32>
    %c0_11 = arith.constant 0 : index
    %c0_12 = arith.constant 0 : index
    %13 = vector.load %arg6[%c0_11, %c0_12] : memref<8x4xf32, #tpu.memory_space<vmem>>, vector<8x4xf32>
    tpu.vector_store %arg6[%c0_11, %c0_12], %12 {strides = array<i32>} : memref<8x4xf32, #tpu.memory_space<vmem>>, vector<8x4xf32>,
    return
  }
  func.func @transform_0(%arg0: i32) -> (i32, i32) {
    %c0_i32 = arith.constant 0 : i32
    %c0_i32_0 = arith.constant 0 : i32
    return %arg0, %c0_i32 : i32, i32
  }
  func.func @transform_1(%arg0: i32) -> (i32, i32) {
    %c0_i32 = arith.constant 0 : i32
    %c0_i32_0 = arith.constant 0 : i32
    %c0_i32_1 = arith.constant 0 : i32
    return %c0_i32, %c0_i32_0 : i32, i32
  }
  func.func @transform_2(%arg0: i32) -> (i32, i32) {
    %c0_i32 = arith.constant 0 : i32
    %c0_i32_0 = arith.constant 0 : i32
    %c0_i32_1 = arith.constant 0 : i32
    return %c0_i32, %c0_i32_0 : i32, i32
  }
  func.func @transform_3(%arg0: i32) -> (i32, i32) {
    %c0_i32 = arith.constant 0 : i32
    %c0_i32_0 = arith.constant 0 : i32
    %c0_i32_1 = arith.constant 0 : i32
    return %c0_i32, %c0_i32_0 : i32, i32
  }
  func.func @transform_4(%arg0: i32) -> (i32, i32) {
    %c0_i32 = arith.constant 0 : i32
    %c0_i32_0 = arith.constant 0 : i32
    %c0_i32_1 = arith.constant 0 : i32
    return %c0_i32, %c0_i32_0 : i32, i32
  }
  func.func @transform_5(%arg0: i32) -> (i32, i32) {
    %c0_i32 = arith.constant 0 : i32
    %c0_i32_0 = arith.constant 0 : i32
    return %arg0, %c0_i32 : i32, i32
  }
}

</mosaic_0001>

<llo_original>
// kernel: dqn_forward.1
$region0: #{dqn_forward.1}
  #allocation0 [shape = 'u32[]', space=smem, size = 0x4, offset = 0x4, fixed_abs, tag = 'smem constant byte address 0x4 - core index']
  #allocation1 [shape = 'u32[144,128]{1,0:T(1,128)}', space=vmem, size = 0x12000, scoped, tag = 'internal scratch']
  %s0 = inlined_call_operand.vmem [shape: bf16[8,4], index: 0, kind: input, shape index: {}]
  %s1 = inlined_call_operand.vmem [shape: bf16[4,128], index: 1, kind: input, shape index: {}]
  %s2 = inlined_call_operand.vmem [shape: f32[1,128], index: 2, kind: input, shape index: {}]
  %s3 = inlined_call_operand.vmem [shape: f32[128,4], index: 3, kind: input, shape index: {}]
  %s4 = inlined_call_operand.vmem [shape: f32[1,4], index: 4, kind: input, shape index: {}]
  %s5 = inlined_call_operand.vmem [shape: f32[8,4], index: 5, kind: output, shape index: {}]
  %s6 = sld [smem:[#allocation0]]
  $region30: #{dqn_forward.1} parent=0
    _
  %s8 = ssub.s32 1, %s6
  %s9 = scalar_select 0, %s8, %s6
  // Predicated region
  $region2: #{dqn_forward.1} parent=0 // pred_check
    _
  $region3: #{dqn_forward.1} parent=0 // pred_check_branch
    %11 = sbr.rel (0) target = $region5
  $region4: #{dqn_forward.1} parent=0 // pred_region
    _
  $region5: #{dqn_forward.1} parent=0 // pred_fallthru
    _
  // Predicated region
  $region6: #{dqn_forward.1} parent=0 // pred_check
    _
  $region7: #{dqn_forward.1} parent=0 // pred_check_branch
    %13 = sbr.rel (0) target = $region9
  $region8: #{dqn_forward.1} parent=0 // pred_region
    _
  $region9: #{dqn_forward.1} parent=0 // pred_fallthru
    _
  // Predicated region
  $region10: #{dqn_forward.1} parent=0 // pred_check
    _
  $region11: #{dqn_forward.1} parent=0 // pred_check_branch
    %15 = sbr.rel (0) target = $region13
  $region12: #{dqn_forward.1} parent=0 // pred_region
    _
  $region13: #{dqn_forward.1} parent=0 // pred_fallthru
    _
  // Predicated region
  $region14: #{dqn_forward.1} parent=0 // pred_check
    _
  $region15: #{dqn_forward.1} parent=0 // pred_check_branch
    %17 = sbr.rel (0) target = $region17
  $region16: #{dqn_forward.1} parent=0 // pred_region
    _
  $region17: #{dqn_forward.1} parent=0 // pred_fallthru
    _
  // Predicated region
  $region18: #{dqn_forward.1} parent=0 // pred_check
    _
  $region19: #{dqn_forward.1} parent=0 // pred_check_branch
    %19 = sbr.rel (0) target = $region21
  $region20: #{dqn_forward.1} parent=0 // pred_region
    _
  $region21: #{dqn_forward.1} parent=0 // pred_fallthru
    _
  %v21 = vld [vmem:[%s0] sm:$0xf]
  %v22 = vld [vmem:[%s1] sm:$0x3]
  %v23 = vld [vmem:[%s2] sm:$0x1]
  %v25 = vlaneseq
  %v26 = vshrl.u32 %v25, 7
  %v27 = vsub.s32 0, %v26
  %v28 = vrot.slane %v23, %v27
  %vm30 = vcmask 31744
  %v32 = vsel %vm30, %v21, 0
  %vm34 = vcmask 1041408
  %v36 = vsel %vm34, %v22, 0
  %38 = vmatprep.subr.bf16.mxu0 0
  %39 = vmatpush1.bf16.msra.mxu0 %v36
  %40 = vmatprep.subr.bf16.mxu0 0
  %41 = vmatpush1.bf16.msra.mxu0 0
  %42 = vmatprep.subr.bf16.mxu0 0
  %43 = vmatpush1.bf16.msra.mxu0 0
  %44 = vmatprep.subr.bf16.mxu0 0
  %45 = vmatpush1.bf16.msra.mxu0 0
  %46 = vmatprep.subr.bf16.mxu0 0
  %47 = vmatpush1.bf16.msra.mxu0 0
  %48 = vmatprep.subr.bf16.mxu0 0
  %49 = vmatpush1.bf16.msra.mxu0 0
  %50 = vmatprep.subr.bf16.mxu0 0
  %51 = vmatpush1.bf16.msra.mxu0 0
  %52 = vmatprep.subr.bf16.mxu0 0
  %53 = vmatpush1.bf16.msra.mxu0 0
  %54 = vmatprep.subr.bf16.mxu0 0
  %55 = vmatpush1.bf16.msra.mxu0 0
  %56 = vmatprep.subr.bf16.mxu0 0
  %57 = vmatpush1.bf16.msra.mxu0 0
  %58 = vmatprep.subr.bf16.mxu0 0
  %59 = vmatpush1.bf16.msra.mxu0 0
  %60 = vmatprep.subr.bf16.mxu0 0
  %61 = vmatpush1.bf16.msra.mxu0 0
  %62 = vmatprep.subr.bf16.mxu0 0
  %63 = vmatpush1.bf16.msra.mxu0 0
  %64 = vmatprep.subr.bf16.mxu0 0
  %65 = vmatpush1.bf16.msra.mxu0 0
  %66 = vmatprep.subr.bf16.mxu0 0
  %67 = vmatpush1.bf16.msra.mxu0 0
  %68 = vmatprep.subr.bf16.mxu0 0
  %69 = vmatpush1.bf16.msra.mxu0 0
  %70 = vmatprep.mubr.bf16.mxu0 0
  %71 = vmatmul.mubr.bf16.gmra.mrb[0].mxu0 %v32
  %v72 = vpop.f32.mrb[0].mxu0
  %v73 = vadd.f32 %v28, %v72
  %v74 = vpop.f32.mrb[0].mxu0
  %v75 = vpop.f32.mrb[0].mxu0
  %v76 = vpop.f32.mrb[0].mxu0
  %77 = vdwg.mxu0
  %v78 = vmax.f32 %v73, 0.0
  %v79 = vld [vmem:[%s3] sm:$0xff]
  %v80 = vld [vmem:[%s3 + $0x8] sm:$0xff]
  %v81 = vld [vmem:[%s3 + $0x10] sm:$0xff]
  %v82 = vld [vmem:[%s3 + $0x18] sm:$0xff]
  %v83 = vld [vmem:[%s3 + $0x20] sm:$0xff]
  %v84 = vld [vmem:[%s3 + $0x28] sm:$0xff]
  %v85 = vld [vmem:[%s3 + $0x30] sm:$0xff]
  %v86 = vld [vmem:[%s3 + $0x38] sm:$0xff]
  %v87 = vld [vmem:[%s3 + $0x40] sm:$0xff]
  %v88 = vld [vmem:[%s3 + $0x48] sm:$0xff]
  %v89 = vld [vmem:[%s3 + $0x50] sm:$0xff]
  %v90 = vld [vmem:[%s3 + $0x58] sm:$0xff]
  %v91 = vld [vmem:[%s3 + $0x60] sm:$0xff]
  %v92 = vld [vmem:[%s3 + $0x68] sm:$0xff]
  %v93 = vld [vmem:[%s3 + $0x70] sm:$0xff]
  %v94 = vld [vmem:[%s3 + $0x78] sm:$0xff]
  %v95 = vld [vmem:[%s4] sm:$0x1]
  %v97 = vlaneseq
  %v98 = vshrl.u32 %v97, 7
  %v99 = vsub.s32 0, %v98
  %v100 = vrot.slane %v95, %v99
  %102 = vmatprep.subr.mxu0 0.0
  %103 = vmatpush1.msra.mxu0 %v79
  %104 = vmatprep.subr.mxu0 0.0
  %105 = vmatpush1.msra.mxu0 %v80
  %106 = vmatprep.subr.mxu0 0.0
  %107 = vmatpush1.msra.mxu0 %v81
  %108 = vmatprep.subr.mxu0 0.0
  %109 = vmatpush1.msra.mxu0 %v82
  %110 = vmatprep.subr.mxu0 0.0
  %111 = vmatpush1.msra.mxu0 %v83
  %112 = vmatprep.subr.mxu0 0.0
  %113 = vmatpush1.msra.mxu0 %v84
  %114 = vmatprep.subr.mxu0 0.0
  %115 = vmatpush1.msra.mxu0 %v85
  %116 = vmatprep.subr.mxu0 0.0
  %117 = vmatpush1.msra.mxu0 %v86
  %118 = vmatprep.subr.mxu0 0.0
  %119 = vmatpush1.msra.mxu0 %v87
  %120 = vmatprep.subr.mxu0 0.0
  %121 = vmatpush1.msra.mxu0 %v88
  %122 = vmatprep.subr.mxu0 0.0
  %123 = vmatpush1.msra.mxu0 %v89
  %124 = vmatprep.subr.mxu0 0.0
  %125 = vmatpush1.msra.mxu0 %v90
  %126 = vmatprep.subr.mxu0 0.0
  %127 = vmatpush1.msra.mxu0 %v91
  %128 = vmatprep.subr.mxu0 0.0
  %129 = vmatpush1.msra.mxu0 %v92
  %130 = vmatprep.subr.mxu0 0.0
  %131 = vmatpush1.msra.mxu0 %v93
  %132 = vmatprep.subr.mxu0 0.0
  %133 = vmatpush1.msra.mxu0 %v94
  %134 = vmatprep.subr.mxu0 0.0
  %135 = vmatpush1.msra.mxu0 0.0
  %136 = vmatprep.subr.mxu0 0.0
  %137 = vmatpush1.msra.mxu0 0.0
  %138 = vmatprep.subr.mxu0 0.0
  %139 = vmatpush1.msra.mxu0 0.0
  %140 = vmatprep.subr.mxu0 0.0
  %141 = vmatpush1.msra.mxu0 0.0
  %142 = vmatprep.subr.mxu0 0.0
  %143 = vmatpush1.msra.mxu0 0.0
  %144 = vmatprep.subr.mxu0 0.0
  %145 = vmatpush1.msra.mxu0 0.0
  %146 = vmatprep.subr.mxu0 0.0
  %147 = vmatpush1.msra.mxu0 0.0
  %148 = vmatprep.subr.mxu0 0.0
  %149 = vmatpush1.msra.mxu0 0.0
  %150 = vmatprep.subr.mxu0 0.0
  %151 = vmatpush1.msra.mxu0 0.0
  %152 = vmatprep.subr.mxu0 0.0
  %153 = vmatpush1.msra.mxu0 0.0
  %154 = vmatprep.subr.mxu0 0.0
  %155 = vmatpush1.msra.mxu0 0.0
  %156 = vmatprep.subr.mxu0 0.0
  %157 = vmatpush1.msra.mxu0 0.0
  %158 = vmatprep.subr.mxu0 0.0
  %159 = vmatpush1.msra.mxu0 0.0
  %160 = vmatprep.subr.mxu0 0.0
  %161 = vmatpush1.msra.mxu0 0.0
  %162 = vmatprep.subr.mxu0 0.0
  %163 = vmatpush1.msra.mxu0 0.0
  %164 = vmatprep.subr.mxu0 0.0
  %165 = vmatpush1.msra.mxu0 0.0
  %166 = vmatprep.mubr.f32.mxu0 0.0
  %167 = vmatmul.mubr.f32.gmra.mrb[0].mxu0 %v78
  %v168 = vpop.f32.mrb[0].mxu0
  %v169 = vadd.f32 %v100, %v168
  %v170 = vpop.f32.mrb[0].mxu0
  %171 = vdwg.mxu0
  %172 = vst.msk [vmem:[%s5] sm:$0xff] %vm30, %v169
  // Predicated region
  $region22: #{dqn_forward.1} parent=0 // pred_check
    _
  $region23: #{dqn_forward.1} parent=0 // pred_check_branch
    %174 = sbr.rel (0) target = $region25
  $region24: #{dqn_forward.1} parent=0 // pred_region
    _
  $region25: #{dqn_forward.1} parent=0 // pred_fallthru
    _
  // Predicated region
  $region26: #{dqn_forward.1} parent=0 // pred_check
    _
  $region27: #{dqn_forward.1} parent=0 // pred_check_branch
    %176 = sbr.rel (0) target = $region29
  $region28: #{dqn_forward.1} parent=0 // pred_region
    _
  $region29: #{dqn_forward.1} parent=0 // pred_fallthru
    _

</llo_original>
